<compile_context>
chip_gen: v7x
topology: tpu7x:2x2x1
jax: 0.10.0
libtpu: 0.0.40
codegen_flags: <defaults>
</compile_context>

<pallas_src>
import functools

import jax
import jax.numpy as jnp
from jax.experimental import pallas as pl
from jax.experimental.pallas import tpu as pltpu

_LANE_CHUNK = 512      # in-kernel reduction chunk (lanes)
_MIN_HW_TILE = 512     # keep strided DMA rows >= 2 KiB contiguous (bf16)


# ---------------------------------------------------------------------------
# Hardware-aware sizing helpers.
# ---------------------------------------------------------------------------

def _vmem_capacity_bytes():
    try:
        return int(pltpu.get_tpu_info().vmem_capacity_bytes)
    except Exception:
        return 64 * 1024 * 1024            # conservative (v7x-class) fallback


def _default_target_block_bytes():
    # v7x: 64 MiB VMEM / 3.2 TB/s HBM -> cap x blocks at ~6 MiB.
    # v5e/v6e: 128 MiB VMEM -> ~12 MiB blocks amortize the ~0.35us/step grid
    # overhead to a few % of the HBM roofline.
    if _vmem_capacity_bytes() <= 64 * 1024 * 1024:
        return 6 * 1024 * 1024
    return 12 * 1024 * 1024


def _choose_tiles(n, c, hw, itemsize, target_bytes):
    """Pick (batch_tile, hw_tile) so one x block is ~target_bytes."""
    per_batch = c * hw * itemsize
    if per_batch <= target_bytes:
        # Whole-HW blocks; tile over batch only, keeping >= 2 batch tiles when
        # possible so both v7x TensorCores get work.
        b_tile = 1
        min_tiles = 2 if n >= 2 else 1
        for cand in range(n, 0, -1):
            if n % cand:
                continue
            if cand * per_batch > target_bytes:
                continue
            if n // cand < min_tiles:
                continue
            b_tile = cand
            break
        return b_tile, hw
    # HW tiling: largest multiple of _MIN_HW_TILE that fits the budget
    # (never falls back to a giant whole-HW block; partial last tile is
    # handled by an in-kernel mask over a cdiv grid).
    hw_tile = (target_bytes // (c * itemsize)) // _MIN_HW_TILE * _MIN_HW_TILE
    hw_tile = max(hw_tile, _MIN_HW_TILE)
    if hw_tile >= hw:
        hw_tile = hw                       # full-dim block is always legal
    return 1, hw_tile


def _vmem_limit_bytes(b_tile, c, ch_pad, hw_tile, in_itemsize, out_itemsize):
    """Scoped-VMEM request: double-buffered x block + in-kernel temporaries."""
    x_block = b_tile * c * hw_tile * in_itemsize
    chunk_len = min(hw_tile, _LANE_CHUNK)
    chunk_tmp = b_tile * c * chunk_len * (4 + in_itemsize)   # f32 + native chunk
    pool = 2 * b_tile * c * 4
    weights = 2 * 2 * c * ch_pad * 4
    out = 2 * b_tile * c * out_itemsize
    mlp_tmp = 8 * b_tile * max(c, ch_pad) * 4
    total = 2 * x_block + 2 * chunk_tmp + pool + weights + out + mlp_tmp
    total += 2 * 1024 * 1024               # slack for compiler-internal scratch
    cap = int(0.9 * _vmem_capacity_bytes())
    return int(max(min(total, cap), 32 * 1024 * 1024))


# ---------------------------------------------------------------------------
# Kernels.
# ---------------------------------------------------------------------------

def _accumulate_block(x_ref, pool_ref, h, hw_start, *, total_hw, needs_mask):
    """Fold this (B, C, HW_tile) block into pool_ref ((2B, C) f32: [sum; max]).

    The reduction is chunked over <=512-lane slices so no full-block f32 copy
    is materialized: the sum accumulates in f32, the max in the native dtype,
    and only the (B, C) chunk results are upcast.  When `needs_mask`, lanes
    beyond total_hw contribute 0 to the sum and -inf to the max.
    """
    b, c, hw_tile = x_ref.shape
    chunk = _LANE_CHUNK
    n_full = hw_tile // chunk
    rem = hw_tile % chunk

    @pl.when(h == 0)
    def _():
        pool_ref[:b] = jnp.zeros((b, c), jnp.float32)
        pool_ref[b:] = jnp.full((b, c), -jnp.inf, jnp.float32)

    def reduce_chunk(off, size):
        xc = x_ref[:, :, pl.ds(off, size)]               # (B, C, size), native dtype
        if needs_mask:
            lane = jax.lax.broadcasted_iota(jnp.int32, xc.shape, 2)
            valid = (lane + off + hw_start) < total_hw
            xs = jnp.where(valid, xc, jnp.zeros_like(xc))
            xm = jnp.where(valid, xc, jnp.full_like(xc, -jnp.inf))
        else:
            xs, xm = xc, xc
        pool_ref[:b] = pool_ref[:b] + jnp.sum(xs.astype(jnp.float32), axis=-1)
        pool_ref[b:] = jnp.maximum(pool_ref[b:],
                                   jnp.max(xm, axis=-1).astype(jnp.float32))

    if n_full > 0:
        if n_full <= 8:
            # Short fixed trip count: fully unroll for LLO scheduling.
            for i in range(n_full):
                reduce_chunk(i * chunk, chunk)
        else:
            def body(i, carry):
                reduce_chunk(pl.multiple_of(i * chunk, chunk), chunk)
                return carry
            jax.lax.fori_loop(0, n_full, body, 0)
    if rem > 0:
        # Remainder only occurs for whole-HW (unmasked) blocks.
        reduce_chunk(n_full * chunk, rem)


def _channel_attention_kernel(x_ref, w1_ref, w2_ref, o_ref, pool_ref, *,
                              total_hw, needs_mask):
    # x_ref:   (B, C, HW_tile) native-dtype block
    # w1_ref:  (C, Ch_pad) fc1 weight^T (f32, zero-padded hidden dim)
    # w2_ref:  (Ch_pad, C) fc2 weight^T (f32)
    # o_ref:   (B, 1, C) output block
    # pool_ref:(2B, C) f32 scratch; rows [:B] running sum, rows [B:] running max
    h = pl.program_id(1)
    nh = pl.num_programs(1)
    b = x_ref.shape[0]
    hw_tile = x_ref.shape[2]

    _accumulate_block(x_ref, pool_ref, h, h * hw_tile,
                      total_hw=total_hw, needs_mask=needs_mask)

    @pl.when(h == nh - 1)
    def _():
        # Scale the sum rows in place -> mean, then one fused MLP over the
        # stacked [avg; max] rows (single pass through fc1/relu/fc2).
        pool_ref[:b] = pool_ref[:b] * jnp.float32(1.0 / total_hw)
        pooled = pool_ref[...]                                       # (2B, C) f32
        hid = jnp.maximum(
            jnp.dot(pooled, w1_ref[...], preferred_element_type=jnp.float32), 0.0)
        y = jnp.dot(hid, w2_ref[...], preferred_element_type=jnp.float32)
        out = jax.nn.sigmoid(y[:b] + y[b:])                          # (B, C)
        o_ref[...] = out[:, None, :].astype(o_ref.dtype)


def _partial_pool_kernel(x_ref, part_ref, acc_ref, *, total_hw, needs_mask,
                         steps_per_split):
    # Phase 1 of the N==1 two-core split: each "parallel" split reduces its
    # half of HW into a (2, C) f32 partial [sum; max].
    s = pl.program_id(0)
    h = pl.program_id(1)
    nh = pl.num_programs(1)
    hw_tile = x_ref.shape[2]
    hw_start = (s * steps_per_split + h) * hw_tile

    _accumulate_block(x_ref, acc_ref, h, hw_start,
                      total_hw=total_hw, needs_mask=needs_mask)

    @pl.when(h == nh - 1)
    def _():
        part_ref[0] = acc_ref[...]


def _combine_mlp_kernel(part_ref, w1_ref, w2_ref, o_ref, *, total_hw):
    # Phase 2: combine per-split partials, run the tiny MLP + sigmoid.
    parts = part_ref[...]                                            # (S, 2, C) f32
    avg = jnp.sum(parts[:, 0, :], axis=0, keepdims=True) * jnp.float32(1.0 / total_hw)
    mx = jnp.max(parts[:, 1, :], axis=0, keepdims=True)              # (1, C)

    def mlp(v):
        hid = jnp.maximum(
            jnp.dot(v, w1_ref[...], preferred_element_type=jnp.float32), 0.0)
        return jnp.dot(hid, w2_ref[...], preferred_element_type=jnp.float32)

    out = jax.nn.sigmoid(mlp(avg) + mlp(mx))                         # (1, C)
    o_ref[...] = out[:, None, :].astype(o_ref.dtype)


# ---------------------------------------------------------------------------
# Wrapper.
# ---------------------------------------------------------------------------

def channel_attention(x_nchw, w1, w2, *, target_block_bytes=None,
                      allow_hw_split=True):
    """x_nchw: (N, C, H, W); w1: (Ch, C) fc1 weight; w2: (C, Ch) fc2 weight.

    Returns sigmoid(fc2(relu(fc1(avg_pool(x)))) + fc2(relu(fc1(max_pool(x)))))
    with shape (N, C, 1, 1) in x's dtype (matches the PyTorch module).
    """
    n, c, h, w = x_nchw.shape
    ch = w1.shape[0]
    hw = h * w
    if target_block_bytes is None:
        target_block_bytes = _default_target_block_bytes()

    # Pure reshape: no transpose, no dtype change, no extra HBM pass over x.
    x = x_nchw.reshape(n, c, hw)

    # fc weights as (C, Ch)/(Ch, C) dense matrices with the tiny hidden dim
    # zero-padded to a lane-friendly 128 multiple (exact no-op through relu).
    ch_pad = max(128, ((ch + 127) // 128) * 128)
    w1_t = jnp.zeros((c, ch_pad), jnp.float32).at[:, :ch].set(
        jnp.transpose(w1).astype(jnp.float32))
    w2_t = jnp.zeros((ch_pad, c), jnp.float32).at[:ch, :].set(
        jnp.transpose(w2).astype(jnp.float32))

    b_tile, hw_tile = _choose_tiles(n, c, hw, x.dtype.itemsize, target_block_bytes)
    n_hw_steps = pl.cdiv(hw, hw_tile)
    needs_mask = (hw % hw_tile) != 0
    vmem_limit = _vmem_limit_bytes(b_tile, c, ch_pad, hw_tile,
                                   x.dtype.itemsize, x_nchw.dtype.itemsize)

    # Single-image (N == 1): split HW across two "parallel" halves so both v7x
    # TensorCores are busy; a tiny combine+MLP kernel finishes the job.
    n_split = 2
    use_split = (allow_hw_split and n == 1 and b_tile == 1
                 and n_hw_steps >= 4 and n_hw_steps % n_split == 0)

    if use_split:
        steps_per_split = n_hw_steps // n_split
        part = pl.pallas_call(
            functools.partial(_partial_pool_kernel, total_hw=hw,
                              needs_mask=needs_mask,
                              steps_per_split=steps_per_split),
            out_shape=jax.ShapeDtypeStruct((n_split, 2, c), jnp.float32),
            grid_spec=pltpu.PrefetchScalarGridSpec(
                num_scalar_prefetch=0,
                grid=(n_split, steps_per_split),
                in_specs=[pl.BlockSpec(
                    (1, c, hw_tile),
                    lambda s, hh: (0, 0, s * steps_per_split + hh))],
                out_specs=pl.BlockSpec((1, 2, c), lambda s, hh: (s, 0, 0)),
                scratch_shapes=[pltpu.VMEM((2, c), jnp.float32)],
            ),
            compiler_params=pltpu.CompilerParams(
                dimension_semantics=("parallel", "arbitrary"),
                vmem_limit_bytes=vmem_limit),
        )(x)
        out = pl.pallas_call(
            functools.partial(_combine_mlp_kernel, total_hw=hw),
            out_shape=jax.ShapeDtypeStruct((1, 1, c), x_nchw.dtype),
        )(part, w1_t, w2_t)
        return out.reshape(n, c, 1, 1)

    # NOTE: pipeline depth on the x BlockSpec (pl.Buffered(3)) is a possible
    # few-% further tweak for the HW-tiled path; kept at the default depth.
    out = pl.pallas_call(
        functools.partial(_channel_attention_kernel, total_hw=hw,
                          needs_mask=needs_mask),
        out_shape=jax.ShapeDtypeStruct((n, 1, c), x_nchw.dtype),
        grid_spec=pltpu.PrefetchScalarGridSpec(
            num_scalar_prefetch=0,
            grid=(n // b_tile, n_hw_steps),
            in_specs=[
                pl.BlockSpec((b_tile, c, hw_tile), lambda bi, hh: (bi, 0, hh)),
                pl.BlockSpec((c, ch_pad), lambda bi, hh: (0, 0)),
                pl.BlockSpec((ch_pad, c), lambda bi, hh: (0, 0)),
            ],
            out_specs=pl.BlockSpec((b_tile, 1, c), lambda bi, hh: (bi, 0, 0)),
            scratch_shapes=[pltpu.VMEM((2 * b_tile, c), jnp.float32)],
        ),
        compiler_params=pltpu.CompilerParams(
            dimension_semantics=("parallel", "arbitrary"),
            vmem_limit_bytes=vmem_limit),
    )(x, w1_t, w2_t)
    # (N, 1, C) -> (N, C, 1, 1): contiguous reshape, no transpose.
    return out.reshape(n, c, 1, 1)


# ---------------------------------------------------------------------------
# Reference / init / tests.
# ---------------------------------------------------------------------------

def _kaiming_normal(key, shape, fan_in, a=1.0):
    # PyTorch kaiming_normal_(a=1): gain = sqrt(2/(1+a^2)) = 1; std = gain/sqrt(fan_in)
    gain = (2.0 / (1.0 + a * a)) ** 0.5
    std = gain / (fan_in ** 0.5)
    return std * jax.random.normal(key, shape, dtype=jnp.float32)


def _reference(x, w1, w2):
    xf = x.astype(jnp.float32)
    avg = jnp.mean(xf, axis=(2, 3))
    mx = jnp.max(xf, axis=(2, 3))

    def mlp(v):
        hmid = jnp.maximum(v @ w1.T, 0.0)
        return hmid @ w2.T

    return jax.nn.sigmoid(mlp(avg) + mlp(mx))[:, :, None, None]


if __name__ == "__main__":
    key = jax.random.PRNGKey(0)
    k1, k2, k3, k4, k5 = jax.random.split(key, 5)

    C, ratio = 32, 16
    Ch = C // ratio
    w1 = _kaiming_normal(k1, (Ch, C), fan_in=C)     # fc1.weight squeezed: (Ch, C)
    w2 = _kaiming_normal(k2, (C, Ch), fan_in=Ch)    # fc2.weight squeezed: (C, Ch)

    # 1) Default path: whole-HW blocks, batch axis parallel on the grid.
    x = jax.random.normal(k3, (2, C, 16, 16), dtype=jnp.float32)
    out = jax.block_until_ready(channel_attention(x, w1, w2))
    assert out.shape == (2, C, 1, 1) and out.dtype == x.dtype
    assert jnp.allclose(out, _reference(x, w1, w2), atol=1e-5, rtol=1e-5)

    # 2) Forced HW tiling with a masked (cdiv) final block: hw=576, tile=512.
    x2 = jax.random.normal(k4, (2, C, 24, 24), dtype=jnp.float32)
    out2 = jax.block_until_ready(
        channel_attention(x2, w1, w2, target_block_bytes=16 * 1024))
    assert jnp.allclose(out2, _reference(x2, w1, w2), atol=1e-5, rtol=1e-5)

    # 3) Single-image two-core split path (hw=2025 -> 4 masked 512-wide steps,
    #    2 "parallel" halves + combine/MLP kernel), vs. the fused path.
    x3 = jax.random.normal(k5, (1, C, 45, 45), dtype=jnp.float32)
    out3 = jax.block_until_ready(
        channel_attention(x3, w1, w2, target_block_bytes=16 * 1024))
    assert out3.shape == (1, C, 1, 1)
    assert jnp.allclose(out3, _reference(x3, w1, w2), atol=1e-5, rtol=1e-5)
    out3b = jax.block_until_ready(
        channel_attention(x3, w1, w2, target_block_bytes=16 * 1024,
                          allow_hw_split=False))
    assert jnp.allclose(out3b, out3, atol=1e-5, rtol=1e-5)

    # 4) Native-dtype path: bf16 x is DMA'd as bf16 and accumulated in f32.
    out_bf16 = jax.block_until_ready(
        channel_attention(x.astype(jnp.bfloat16), w1, w2))
    assert out_bf16.dtype == jnp.bfloat16
    assert jnp.allclose(out_bf16.astype(jnp.float32),
                        _reference(x.astype(jnp.bfloat16), w1, w2), atol=2e-2)

    print("KERNEL_OK")
</pallas_src>

<mosaic_0001>
module attributes {stable_mosaic.version = 11 : i64} {
  func.func @_channel_attention_kernel(%arg0: i32, %arg1: i32, %arg2: memref<1x32x256xf32, #tpu.memory_space<vmem>>, %arg3: memref<32x128xf32, #tpu.memory_space<vmem>>, %arg4: memref<128x32xf32, #tpu.memory_space<vmem>>, %arg5: memref<1x1x32xf32, #tpu.memory_space<vmem>>, %arg6: memref<2x32xf32, #tpu.memory_space<vmem>>) attributes {dimension_semantics = [#tpu.dimension_semantics<parallel>, #tpu.dimension_semantics<arbitrary>], iteration_bounds = array<i64: 2, 1>, scalar_prefetch = 0 : i64, scratch_operands = 1 : i64, tpu.core_type = #tpu.core_type<tc>, window_params = [{transform_indices = @transform_0, window_bounds = array<i64: 1, 32, 256>}, {pipeline_mode = #tpu.pipeline_mode<synchronous>, transform_indices = @transform_1, window_bounds = array<i64: 32, 128>}, {pipeline_mode = #tpu.pipeline_mode<synchronous>, transform_indices = @transform_2, window_bounds = array<i64: 128, 32>}, {transform_indices = @transform_3, window_bounds = array<i64: 1, 1, 32>}]} {
    %c0_i32 = arith.constant 0 : i32
    %0 = arith.cmpi eq, %arg1, %c0_i32 : i32
    %1 = arith.extui %0 : i1 to i32
    %c0_i32_0 = arith.constant 0 : i32
    %2 = arith.cmpi ne, %1, %c0_i32_0 : i32
    scf.if %2 {
      %cst_13 = arith.constant 0.000000e+00 : f32
      %15 = vector.broadcast %cst_13 : f32 to vector<1x32xf32>
      %c0_14 = arith.constant 0 : index
      %c0_15 = arith.constant 0 : index
      %16 = vector.load %arg6[%c0_14, %c0_15] : memref<2x32xf32, #tpu.memory_space<vmem>>, vector<1x32xf32>
      tpu.vector_store %arg6[%c0_14, %c0_15], %15 {strides = array<i32>} : memref<2x32xf32, #tpu.memory_space<vmem>>, vector<1x32xf32>,
      %cst_16 = arith.constant 0xFF800000 : f32
      %17 = vector.broadcast %cst_16 : f32 to vector<1x32xf32>
      %c1_17 = arith.constant 1 : index
      %c0_18 = arith.constant 0 : index
      %18 = vector.load %arg6[%c1_17, %c0_18] : memref<2x32xf32, #tpu.memory_space<vmem>>, vector<1x32xf32>
      tpu.vector_store %arg6[%c1_17, %c0_18], %17 {strides = array<i32>} : memref<2x32xf32, #tpu.memory_space<vmem>>, vector<1x32xf32>,
    } else {
    }
    %c0 = arith.constant 0 : index
    %c0_1 = arith.constant 0 : index
    %c0_2 = arith.constant 0 : index
    %3 = vector.load %arg2[%c0, %c0_1, %c0_2] : memref<1x32x256xf32, #tpu.memory_space<vmem>>, vector<1x32x256xf32>
    %c0_3 = arith.constant 0 : index
    %c0_4 = arith.constant 0 : index
    %4 = vector.load %arg6[%c0_3, %c0_4] : memref<2x32xf32, #tpu.memory_space<vmem>>, vector<1x32xf32>
    %cst = arith.constant dense<0.000000e+00> : vector<1x32xf32>
    %5 = vector.multi_reduction <add>, %3, %cst [2] : vector<1x32x256xf32> to vector<1x32xf32>
    %6 = arith.addf %4, %5 : vector<1x32xf32>
    %c0_5 = arith.constant 0 : index
    %c0_6 = arith.constant 0 : index
    %7 = vector.load %arg6[%c0_5, %c0_6] : memref<2x32xf32, #tpu.memory_space<vmem>>, vector<1x32xf32>
    tpu.vector_store %arg6[%c0_5, %c0_6], %6 {strides = array<i32>} : memref<2x32xf32, #tpu.memory_space<vmem>>, vector<1x32xf32>,
    %c1 = arith.constant 1 : index
    %c0_7 = arith.constant 0 : index
    %8 = vector.load %arg6[%c1, %c0_7] : memref<2x32xf32, #tpu.memory_space<vmem>>, vector<1x32xf32>
    %cst_8 = arith.constant dense<0xFF800000> : vector<1x32xf32>
    %9 = vector.multi_reduction <maximumf>, %3, %cst_8 [2] : vector<1x32x256xf32> to vector<1x32xf32>
    %10 = arith.maximumf %8, %9 : vector<1x32xf32>
    %c1_9 = arith.constant 1 : index
    %c0_10 = arith.constant 0 : index
    %11 = vector.load %arg6[%c1_9, %c0_10] : memref<2x32xf32, #tpu.memory_space<vmem>>, vector<1x32xf32>
    tpu.vector_store %arg6[%c1_9, %c0_10], %10 {strides = array<i32>} : memref<2x32xf32, #tpu.memory_space<vmem>>, vector<1x32xf32>,
    %c0_i32_11 = arith.constant 0 : i32
    %12 = arith.cmpi eq, %arg1, %c0_i32_11 : i32
    %13 = arith.extui %12 : i1 to i32
    %c0_i32_12 = arith.constant 0 : i32
    %14 = arith.cmpi ne, %13, %c0_i32_12 : i32
    scf.if %14 {
      %c0_13 = arith.constant 0 : index
      %c0_14 = arith.constant 0 : index
      %15 = vector.load %arg6[%c0_13, %c0_14] : memref<2x32xf32, #tpu.memory_space<vmem>>, vector<1x32xf32>
      %cst_15 = arith.constant 3.906250e-03 : f32
      %16 = vector.broadcast %cst_15 : f32 to vector<1x32xf32>
      %17 = arith.mulf %15, %16 : vector<1x32xf32>
      %c0_16 = arith.constant 0 : index
      %c0_17 = arith.constant 0 : index
      %18 = vector.load %arg6[%c0_16, %c0_17] : memref<2x32xf32, #tpu.memory_space<vmem>>, vector<1x32xf32>
      tpu.vector_store %arg6[%c0_16, %c0_17], %17 {strides = array<i32>} : memref<2x32xf32, #tpu.memory_space<vmem>>, vector<1x32xf32>,
      %c0_18 = arith.constant 0 : index
      %c0_19 = arith.constant 0 : index
      %19 = vector.load %arg6[%c0_18, %c0_19] : memref<2x32xf32, #tpu.memory_space<vmem>>, vector<2x32xf32>
      %c0_20 = arith.constant 0 : index
      %c0_21 = arith.constant 0 : index
      %20 = vector.load %arg3[%c0_20, %c0_21] : memref<32x128xf32, #tpu.memory_space<vmem>>, vector<32x128xf32>
      %cst_22 = arith.constant dense<0.000000e+00> : vector<2x128xf32>
      %21 = tpu.matmul %19, %20, %cst_22 {dimension_numbers = #tpu.dot_dimension_numbers<[1], [0], [0], [1], [0, 0, 1, 1], [], []>} : vector<2x32xf32>, vector<32x128xf32>, vector<2x128xf32> -> vector<2x128xf32>
      %cst_23 = arith.constant 0.000000e+00 : f32
      %22 = vector.broadcast %cst_23 : f32 to vector<2x128xf32>
      %23 = arith.maximumf %21, %22 : vector<2x128xf32>
      %c0_24 = arith.constant 0 : index
      %c0_25 = arith.constant 0 : index
      %24 = vector.load %arg4[%c0_24, %c0_25] : memref<128x32xf32, #tpu.memory_space<vmem>>, vector<128x32xf32>
      %cst_26 = arith.constant dense<0.000000e+00> : vector<2x32xf32>
      %25 = tpu.matmul %23, %24, %cst_26 {dimension_numbers = #tpu.dot_dimension_numbers<[1], [0], [0], [1], [0, 0, 1, 1], [], []>} : vector<2x128xf32>, vector<128x32xf32>, vector<2x32xf32> -> vector<2x32xf32>
      %26 = vector.extract_strided_slice %25 {offsets = [0, 0], sizes = [1, 32], strides = [1, 1]} : vector<2x32xf32> to vector<1x32xf32>
      %27 = vector.extract_strided_slice %25 {offsets = [1, 0], sizes = [1, 32], strides = [1, 1]} : vector<2x32xf32> to vector<1x32xf32>
      %28 = arith.addf %26, %27 : vector<1x32xf32>
      %29 = arith.negf %28 : vector<1x32xf32>
      %30 = math.exp %29 : vector<1x32xf32>
      %cst_27 = arith.constant 1.000000e+00 : f32
      %31 = vector.broadcast %cst_27 : f32 to vector<1x32xf32>
      %32 = arith.addf %31, %30 : vector<1x32xf32>
      %33 = arith.divf %31, %32 : vector<1x32xf32>
      %34 = vector.shape_cast %33 : vector<1x32xf32> to vector<1x1x32xf32>
      %c0_28 = arith.constant 0 : index
      %c0_29 = arith.constant 0 : index
      %c0_30 = arith.constant 0 : index
      %35 = vector.load %arg5[%c0_28, %c0_29, %c0_30] : memref<1x1x32xf32, #tpu.memory_space<vmem>>, vector<1x1x32xf32>
      tpu.vector_store %arg5[%c0_28, %c0_29, %c0_30], %34 {strides = array<i32>} : memref<1x1x32xf32, #tpu.memory_space<vmem>>, vector<1x1x32xf32>,
    } else {
    }
    return
  }
  func.func @transform_0(%arg0: i32, %arg1: i32) -> (i32, i32, i32) {
    %c0_i32 = arith.constant 0 : i32
    %c0_i32_0 = arith.constant 0 : i32
    return %arg0, %c0_i32, %arg1 : i32, i32, i32
  }
  func.func @transform_1(%arg0: i32, %arg1: i32) -> (i32, i32) {
    %c0_i32 = arith.constant 0 : i32
    %c0_i32_0 = arith.constant 0 : i32
    %c0_i32_1 = arith.constant 0 : i32
    return %c0_i32, %c0_i32_0 : i32, i32
  }
  func.func @transform_2(%arg0: i32, %arg1: i32) -> (i32, i32) {
    %c0_i32 = arith.constant 0 : i32
    %c0_i32_0 = arith.constant 0 : i32
    %c0_i32_1 = arith.constant 0 : i32
    return %c0_i32, %c0_i32_0 : i32, i32
  }
  func.func @transform_3(%arg0: i32, %arg1: i32) -> (i32, i32, i32) {
    %c0_i32 = arith.constant 0 : i32
    %c0_i32_0 = arith.constant 0 : i32
    %c0_i32_1 = arith.constant 0 : i32
    return %arg0, %c0_i32, %c0_i32_0 : i32, i32, i32
  }
}

</mosaic_0001>

<llo_original>
// kernel: tpu_custom_call.1
$region0: #{tpu_custom_call.1}
  #allocation0 [shape = 'u32[]', space=smem, size = 0x4, offset = 0x4, fixed_abs, tag = 'smem constant byte address 0x4 - core index']
  #allocation1 [shape = 'u32[144,128]{1,0:T(1,128)}', space=vmem, size = 0x12000, scoped, tag = 'internal scratch']
  #allocation2 [shape = 'f32[2,32]{1,0:T(2,128)}', space=vmem, size = 0x400, scoped, tag = 'scratch operand']
  %s0 = inlined_call_operand.vmem [shape: f32[2,32,256], index: 0, kind: input, shape index: {}]
  %s1 = inlined_call_operand.vmem [shape: f32[32,128], index: 1, kind: input, shape index: {}]
  %s2 = inlined_call_operand.vmem [shape: f32[128,32], index: 2, kind: input, shape index: {}]
  %s3 = inlined_call_operand.hbm [shape: f32[2,1,32], index: 3, kind: output, shape index: {}]
  %s4 = sld [smem:[#allocation0]]
  $region53: #{tpu_custom_call.1} parent=0
    _
  %s6 = ssub.s32 1, %s4
  %s7 = scalar_select 0, %s6, %s4
  $region1: #{tpu_custom_call.1} parent=0
    #allocation3 [shape = 'u8[1024]{0}', space=vmem, size = 0x400, scoped, tag = 'output window, operand 0']
    #allocation4 [shape = 's32[2]{0}', space=sflag, size = 0x8, scoped, tag = 'scoped memory for tpu_custom_call.1']
    %8 = vsyncpa [#allocation4], 0
    %s9 = scalar_lea.sflag [#allocation4], 1
    %10 = vsyncpa %s9, 0
    loop: start=0, step=1, limit=4
    $region2: #{tpu_custom_call.1} parent=1 // loop_pre_header
      _
    $region3: #{tpu_custom_call.1} parent=1 // loop_header
      %s12 = sphi 0, %s16
      %p13 = scmp.ge.s32.totalorder %s12, 4
      %s19 = sphi 0, %s31
      %s20 = sphi 0, %s27
      %s21 = sphi 0, %s19
      %s22 = sphi 0, %s20
      %s23 = sphi 0, %s21
      %s24 = sphi 0, %s22
      %s36 = sphi 0, %s38
      %s39 = sphi 0, %s36
      %s40 = sphi 0, %s39
      %s56 = sphi 0, %s40
      %s60 = sphi 0, %s60
      %s62 = sphi 0, %s60
      %s63 = sphi 0, %s62
      %s77 = sphi 0, %s63
      %s81 = sphi 0, %s81
      %s83 = sphi 0, %s81
      %s84 = sphi 0, %s83
      %s98 = sphi 0, %s84
      %s104 = sphi 0, %s106
      %s107 = sphi 0, %s104
      %s108 = sphi 0, %s107
      %s124 = sphi 0, %s108
    $region4: #{tpu_custom_call.1} parent=1 // loop_header_branch
      %15 = sbr.rel (%p13) target = $region8
    $region5: #{tpu_custom_call.1} parent=1 // loop_body
      %s17 = ssub.s32 %s12, 1
      %s18 = ssub.s32 %s12, 2
      %s25 = sadd.s32 1, %s20
      %p26 = scmp.ge.s32.totalorder %s25, 1
      %s27 = scalar_select %p26, 0, %s25
      %s28 = sadd.s32 1, %s19
      %s29 = scalar_select %p26, %s28, %s19
      %p30 = scmp.ge.s32.totalorder %s29, 2
      %s31 = scalar_select %p30, 0, %s29
      %s32 = ssub.s32 %s19, %s31
      %s33 = ssub.s32 %s20, %s27
      %s34 = sor.u32 %s32, %s33
      %p35 = scmp.eq.s32.totalorder %s34, 0
      %s37 = sadd.s32 %s36, 1
      %s38 = scalar_select %p35, %s36, %s37
      %p41 = pneg %p35
      %p42 = scmp.eq.s32.totalorder %s12, 1
      %p43 = por %p41, %p42
      %p44 = scmp.ne.s32.totalorder %s36, %s39
      %p45 = scmp.eq.s32.totalorder %s12, 0
      %p46 = por %p44, %p45
      %p47 = scmp.ne.s32.totalorder %s36, %s39
      %p48 = scmp.eq.s32.totalorder %s17, 1
      %p49 = por %p47, %p48
      %p50 = scmp.ne.s32.totalorder %s39, %s40
      %p51 = scmp.eq.s32.totalorder %s17, 0
      %p52 = por %p50, %p51
      %p53 = scmp.ne.s32.totalorder %s39, %s40
      %p54 = scmp.eq.s32.totalorder %s18, 1
      %p55 = por %p53, %p54
      %p57 = scmp.ne.s32.totalorder %s40, %s56
      %p58 = scmp.eq.s32.totalorder %s18, 0
      %p59 = por %p57, %p58
      %s61 = sadd.s32 %s60, 1
      %p64 = scmp.eq.s32.totalorder %s12, 1
      %p65 = scmp.ne.s32.totalorder %s60, %s62
      %p66 = scmp.eq.s32.totalorder %s12, 0
      %p67 = por %p65, %p66
      %p68 = scmp.ne.s32.totalorder %s60, %s62
      %p69 = scmp.eq.s32.totalorder %s17, 1
      %p70 = por %p68, %p69
      %p71 = scmp.ne.s32.totalorder %s62, %s63
      %p72 = scmp.eq.s32.totalorder %s17, 0
      %p73 = por %p71, %p72
      %p74 = scmp.ne.s32.totalorder %s62, %s63
      %p75 = scmp.eq.s32.totalorder %s18, 1
      %p76 = por %p74, %p75
      %p78 = scmp.ne.s32.totalorder %s63, %s77
      %p79 = scmp.eq.s32.totalorder %s18, 0
      %p80 = por %p78, %p79
      %s82 = sadd.s32 %s81, 1
      %p85 = scmp.eq.s32.totalorder %s12, 1
      %p86 = scmp.ne.s32.totalorder %s81, %s83
      %p87 = scmp.eq.s32.totalorder %s12, 0
      %p88 = por %p86, %p87
      %p89 = scmp.ne.s32.totalorder %s81, %s83
      %p90 = scmp.eq.s32.totalorder %s17, 1
      %p91 = por %p89, %p90
      %p92 = scmp.ne.s32.totalorder %s83, %s84
      %p93 = scmp.eq.s32.totalorder %s17, 0
      %p94 = por %p92, %p93
      %p95 = scmp.ne.s32.totalorder %s83, %s84
      %p96 = scmp.eq.s32.totalorder %s18, 1
      %p97 = por %p95, %p96
      %p99 = scmp.ne.s32.totalorder %s84, %s98
      %p100 = scmp.eq.s32.totalorder %s18, 0
      %p101 = por %p99, %p100
      %s102 = ssub.s32 %s19, %s31
      %p103 = scmp.eq.s32.totalorder %s102, 0
      %s105 = sadd.s32 %s104, 1
      %s106 = scalar_select %p103, %s104, %s105
      %p109 = pneg %p103
      %p110 = scmp.eq.s32.totalorder %s12, 1
      %p111 = por %p109, %p110
      %p112 = scmp.ne.s32.totalorder %s104, %s107
      %p113 = scmp.eq.s32.totalorder %s12, 0
      %p114 = por %p112, %p113
      %p115 = scmp.ne.s32.totalorder %s104, %s107
      %p116 = scmp.eq.s32.totalorder %s17, 1
      %p117 = por %p115, %p116
      %p118 = scmp.ne.s32.totalorder %s107, %s108
      %p119 = scmp.eq.s32.totalorder %s17, 0
      %p120 = por %p118, %p119
      %p121 = scmp.ne.s32.totalorder %s107, %s108
      %p122 = scmp.eq.s32.totalorder %s18, 1
      %p123 = por %p121, %p122
      %p125 = scmp.ne.s32.totalorder %s108, %s124
      %p126 = scmp.eq.s32.totalorder %s18, 0
      %p127 = por %p125, %p126
      %p128 = scmp.le.s32.totalorder 1, %s12
      %p129 = scmp.lt.s32.totalorder %s12, 3
      %p130 = pnand %p128, %p129
      %p131 = pneg %p130
      // Predicated region
      $region9: #{tpu_custom_call.1} parent=5 // pred_check
        _
      $region10: #{tpu_custom_call.1} parent=5 // pred_check_branch
        %133 = sbr.rel (%p130) target = $region12
      $region11: #{tpu_custom_call.1} parent=5 // pred_region
        %s134 = ssub.s32 %s12, 1
        // Predicated region
        $region13: #{tpu_custom_call.1} parent=11 // pred_check
          %p135 = pneg %p73
        $region14: #{tpu_custom_call.1} parent=11 // pred_check_branch
          %137 = sbr.rel (%p135) target = $region16
        $region15: #{tpu_custom_call.1} parent=11 // pred_region
          _
        $region16: #{tpu_custom_call.1} parent=11 // pred_fallthru
          _
        // Predicated region
        $region17: #{tpu_custom_call.1} parent=11 // pred_check
          %p138 = pneg %p94
        $region18: #{tpu_custom_call.1} parent=11 // pred_check_branch
          %140 = sbr.rel (%p138) target = $region20
        $region19: #{tpu_custom_call.1} parent=11 // pred_region
          _
        $region20: #{tpu_custom_call.1} parent=11 // pred_fallthru
          _
      $region12: #{tpu_custom_call.1} parent=5 // pred_fallthru
        _
      %p141 = scmp.lt.s32.totalorder %s12, 2
      // Predicated region
      $region21: #{tpu_custom_call.1} parent=5 // pred_check
        %p142 = pneg %p141
      $region22: #{tpu_custom_call.1} parent=5 // pred_check_branch
        %144 = sbr.rel (%p142) target = $region24
      $region23: #{tpu_custom_call.1} parent=5 // pred_region
        // Predicated region
        $region25: #{tpu_custom_call.1} parent=23 // pred_check
          %p145 = pneg %p46
        $region26: #{tpu_custom_call.1} parent=23 // pred_check_branch
          %147 = sbr.rel (%p145) target = $region28
        $region27: #{tpu_custom_call.1} parent=23 // pred_region
          %s148 = smul.u32 2, %s20
          %p149 = scmp.lt.s32.totalorder %s19, 1
          %s150 = scalar_select %p149, %s19, 1
          %p151 = scmp.lt.s32.totalorder %s148, 1
          %s152 = scalar_select %p151, %s148, 1
          %s153 = smul.addr %s150, 8
          %s154 = sadd.s32 %s152, %s153
          %s155 = smul.addr %s154, 8
          %s156 = scalar_lea.vmem %s0, %s155
          %s157 = smul.u32 2, %s20
        $region28: #{tpu_custom_call.1} parent=23 // pred_fallthru
          _
      $region24: #{tpu_custom_call.1} parent=5 // pred_fallthru
        _
      %p158 = scmp.le.s32.totalorder 1, %s12
      %p159 = scmp.lt.s32.totalorder %s12, 3
      %p160 = pnand %p158, %p159
      %p161 = pneg %p160
      // Predicated region
      $region29: #{tpu_custom_call.1} parent=5 // pred_check
        _
      $region30: #{tpu_custom_call.1} parent=5 // pred_check_branch
        %163 = sbr.rel (%p160) target = $region32
      $region31: #{tpu_custom_call.1} parent=5 // pred_region
        %s164 = ssub.s32 %s12, 1
        %s165 = smul.u32 2, %s22
        %p166 = scmp.lt.s32.totalorder %s21, 1
        %s167 = scalar_select %p166, %s21, 1
        %p168 = scmp.lt.s32.totalorder %s165, 1
        %s169 = scalar_select %p168, %s165, 1
        %s170 = smul.addr %s167, 8
        %s171 = sadd.s32 %s169, %s170
        %s172 = smul.addr %s171, 8
        %s173 = scalar_lea.vmem %s0, %s172
        %p174 = pneg %p52
        %p175 = pneg %p49
        %p176 = pneg %p73
        %p177 = pneg %p70
        %p178 = pneg %p94
        %p179 = pneg %p91
        %p180 = pneg %p120
        %p181 = pneg %p117
        %s182 = sand.u32 %s107, 1
        %s183 = scalar_lea.sflag [#allocation4], %s182
        %s184 = sand.u32 %s107, 1
        %s185 = scalar_lea.vmem [#allocation3], %s184
        %s186 = smul.u32 2, %s22
        %p187 = scmp.lt.s32.totalorder %s21, 1
        %s188 = scalar_select %p187, %s21, 1
        %p189 = scmp.lt.s32.totalorder %s186, 1
        %s190 = scalar_select %p189, %s186, 1
        %s191 = smul.addr %s188, 8
        %s192 = sadd.s32 %s190, %s191
        %s193 = smul.addr %s192, 8
        %s194 = scalar_lea.vmem %s0, %s193
        %s195 = smul.u32 2, %s22
        %p196 = scmp.eq.s32.totalorder %s22, 0
        // Predicated region
        $region33: #{tpu_custom_call.1} parent=31 // pred_check
          %p197 = pneg %p196
        $region34: #{tpu_custom_call.1} parent=31 // pred_check_branch
          %199 = sbr.rel (%p197) target = $region36
        $region35: #{tpu_custom_call.1} parent=31 // pred_region
          %vm200 = vcmask 253952
          %201 = vst.msk [vmem:[#allocation2] sm:$0x1] %vm200, 0.0
          %202 = vst.msk [vmem:[#allocation2 + $0x1] sm:$0x1] %vm200, -inf
        $region36: #{tpu_custom_call.1} parent=31 // pred_fallthru
          _
        %v203 = vld [vmem:[%s194] sm:$0xff]
        %v204 = vld [vmem:[%s194 + $0x8] sm:$0xff]
        %v205 = vld [vmem:[%s194 + $0x10] sm:$0xff]
        %v206 = vld [vmem:[%s194 + $0x18] sm:$0xff]
        %v207 = vld [vmem:[%s194 + $0x20] sm:$0xff]
        %v208 = vld [vmem:[%s194 + $0x28] sm:$0xff]
        %v209 = vld [vmem:[%s194 + $0x30] sm:$0xff]
        %v210 = vld [vmem:[%s194 + $0x38] sm:$0xff]
        %v211 = vld [vmem:[#allocation2] sm:$0x1]
        %v212 = vadd.f32 %v203, %v204
        %213 = vadd.xlane.f32.xlu0 %v212
        %v214 = vpop.xlane.xlu0 %213
        %v215 = vadd.f32 %v205, %v206
        %216 = vadd.xlane.f32.xlu0 %v215
        %v217 = vpop.xlane.xlu0 %216
        %v218 = vadd.f32 %v207, %v208
        %219 = vadd.xlane.f32.xlu0 %v218
        %v220 = vpop.xlane.xlu0 %219
        %v221 = vadd.f32 %v209, %v210
        %222 = vadd.xlane.f32.xlu0 %v221
        %v223 = vpop.xlane.xlu0 %222
        %v228 = vlaneseq
        %v229 = vand.u32 %v228, 127
        %v230 = vlaneseq
        %v231 = vshrl.u32 %v230, 7
        %v232 = vsub.s32 %v229, %v231
        %v233 = vrot.slane %v214, %v232
        %v234 = vadd.s32 %v229, 4294967288
        %v235 = vlaneseq
        %v236 = vshrl.u32 %v235, 7
        %v237 = vsub.s32 %v234, %v236
        %v238 = vrot.slane %v217, %v237
        %vm239 = vcmask 130112
        %v240 = vsel %vm239, %v238, %v233
        %v241 = vadd.s32 %v229, 4294967280
        %v242 = vlaneseq
        %v243 = vshrl.u32 %v242, 7
        %v244 = vsub.s32 %v241, %v243
        %v245 = vrot.slane %v220, %v244
        %vm246 = vcmask 195712
        %v247 = vsel %vm246, %v245, %v240
        %v248 = vadd.s32 %v229, 4294967272
        %v249 = vlaneseq
        %v250 = vshrl.u32 %v249, 7
        %v251 = vsub.s32 %v248, %v250
        %v252 = vrot.slane %v223, %v251
        %vm253 = vcmask 261312
        %v254 = vsel %vm253, %v252, %v247
        %v256 = vadd.f32 %v211, %v254
        %vm257 = vcmask 253952
        %258 = vst.msk [vmem:[#allocation2] sm:$0x1] %vm257, %v256
        %v259 = vld [vmem:[#allocation2 + $0x1] sm:$0x1]
        %v260 = vmax.f32 %v203, %v204
        %261 = vmax.xlane.f32.xlu0 %v260
        %v262 = vpop.xlane.xlu0 %261
        %v263 = vmax.f32 %v205, %v206
        %264 = vmax.xlane.f32.xlu0 %v263
        %v265 = vpop.xlane.xlu0 %264
        %v266 = vmax.f32 %v207, %v208
        %267 = vmax.xlane.f32.xlu0 %v266
        %v268 = vpop.xlane.xlu0 %267
        %v269 = vmax.f32 %v209, %v210
        %270 = vmax.xlane.f32.xlu0 %v269
        %v271 = vpop.xlane.xlu0 %270
        %v276 = vlaneseq
        %v277 = vshrl.u32 %v276, 7
        %v278 = vsub.s32 %v229, %v277
        %v279 = vrot.slane %v262, %v278
        %v280 = vlaneseq
        %v281 = vshrl.u32 %v280, 7
        %v282 = vsub.s32 %v234, %v281
        %v283 = vrot.slane %v265, %v282
        %v284 = vsel %vm239, %v283, %v279
        %v285 = vlaneseq
        %v286 = vshrl.u32 %v285, 7
        %v287 = vsub.s32 %v241, %v286
        %v288 = vrot.slane %v268, %v287
        %v289 = vsel %vm246, %v288, %v284
        %v290 = vlaneseq
        %v291 = vshrl.u32 %v290, 7
        %v292 = vsub.s32 %v248, %v291
        %v293 = vrot.slane %v271, %v292
        %v294 = vsel %vm253, %v293, %v289
        %v296 = vmax.f32 %v259, %v294
        %297 = vst.msk [vmem:[#allocation2 + $0x1] sm:$0x1] %vm257, %v296
        // Predicated region
        $region37: #{tpu_custom_call.1} parent=31 // pred_check
          %p298 = pneg %p196
        $region38: #{tpu_custom_call.1} parent=31 // pred_check_branch
          %300 = sbr.rel (%p298) target = $region40
        $region39: #{tpu_custom_call.1} parent=31 // pred_region
          %v301 = vld [vmem:[#allocation2] sm:$0x1]
          %v302 = vmul.f32 %v301, 0.00390625
          %303 = vst.msk [vmem:[#allocation2] sm:$0x1] %vm257, %v302
          %v304 = vld [vmem:[#allocation2] sm:$0x3]
          %v305 = vld [vmem:[%s1] sm:$0xff]
          %v306 = vld [vmem:[%s1 + $0x8] sm:$0xff]
          %v307 = vld [vmem:[%s1 + $0x10] sm:$0xff]
          %v308 = vld [vmem:[%s1 + $0x18] sm:$0xff]
          %vm309 = vcmask 261120
          %v311 = vsel %vm309, %v304, 0
          %313 = vmatprep.subr.mxu0 0.0
          %314 = vmatpush1.msra.mxu0 %v305
          %315 = vmatprep.subr.mxu0 0.0
          %316 = vmatpush1.msra.mxu0 %v306
          %317 = vmatprep.subr.mxu0 0.0
          %318 = vmatpush1.msra.mxu0 %v307
          %319 = vmatprep.subr.mxu0 0.0
          %320 = vmatpush1.msra.mxu0 %v308
          %321 = vmatprep.subr.mxu0 0.0
          %322 = vmatpush1.msra.mxu0 0.0
          %323 = vmatprep.subr.mxu0 0.0
          %324 = vmatpush1.msra.mxu0 0.0
          %325 = vmatprep.subr.mxu0 0.0
          %326 = vmatpush1.msra.mxu0 0.0
          %327 = vmatprep.subr.mxu0 0.0
          %328 = vmatpush1.msra.mxu0 0.0
          %329 = vmatprep.subr.mxu0 0.0
          %330 = vmatpush1.msra.mxu0 0.0
          %331 = vmatprep.subr.mxu0 0.0
          %332 = vmatpush1.msra.mxu0 0.0
          %333 = vmatprep.subr.mxu0 0.0
          %334 = vmatpush1.msra.mxu0 0.0
          %335 = vmatprep.subr.mxu0 0.0
          %336 = vmatpush1.msra.mxu0 0.0
          %337 = vmatprep.subr.mxu0 0.0
          %338 = vmatpush1.msra.mxu0 0.0
          %339 = vmatprep.subr.mxu0 0.0
          %340 = vmatpush1.msra.mxu0 0.0
          %341 = vmatprep.subr.mxu0 0.0
          %342 = vmatpush1.msra.mxu0 0.0
          %343 = vmatprep.subr.mxu0 0.0
          %344 = vmatpush1.msra.mxu0 0.0
          %345 = vmatprep.subr.mxu0 0.0
          %346 = vmatpush1.msra.mxu0 0.0
          %347 = vmatprep.subr.mxu0 0.0
          %348 = vmatpush1.msra.mxu0 0.0
          %349 = vmatprep.subr.mxu0 0.0
          %350 = vmatpush1.msra.mxu0 0.0
          %351 = vmatprep.subr.mxu0 0.0
          %352 = vmatpush1.msra.mxu0 0.0
          %353 = vmatprep.subr.mxu0 0.0
          %354 = vmatpush1.msra.mxu0 0.0
          %355 = vmatprep.subr.mxu0 0.0
          %356 = vmatpush1.msra.mxu0 0.0
          %357 = vmatprep.subr.mxu0 0.0
          %358 = vmatpush1.msra.mxu0 0.0
          %359 = vmatprep.subr.mxu0 0.0
          %360 = vmatpush1.msra.mxu0 0.0
          %361 = vmatprep.subr.mxu0 0.0
          %362 = vmatpush1.msra.mxu0 0.0
          %363 = vmatprep.subr.mxu0 0.0
          %364 = vmatpush1.msra.mxu0 0.0
          %365 = vmatprep.subr.mxu0 0.0
          %366 = vmatpush1.msra.mxu0 0.0
          %367 = vmatprep.subr.mxu0 0.0
          %368 = vmatpush1.msra.mxu0 0.0
          %369 = vmatprep.subr.mxu0 0.0
          %370 = vmatpush1.msra.mxu0 0.0
          %371 = vmatprep.subr.mxu0 0.0
          %372 = vmatpush1.msra.mxu0 0.0
          %373 = vmatprep.subr.mxu0 0.0
          %374 = vmatpush1.msra.mxu0 0.0
          %375 = vmatprep.subr.mxu0 0.0
          %376 = vmatpush1.msra.mxu0 0.0
          %377 = vmatprep.mubr.f32.mxu0 0.0
          %378 = vmatmul.mubr.f32.gmra.mrb[0].mxu0 %v311
          %v379 = vpop.f32.mrb[0].mxu0
          %v380 = vadd.f32 0.0, %v379
          %v381 = vpop.f32.mrb[0].mxu0
          %382 = vdwg.mxu0
          %v383 = vmax.f32 %v380, 0.0
          %v384 = vld [vmem:[%s2] sm:$0xff]
          %v385 = vld [vmem:[%s2 + $0x8] sm:$0xff]
          %v386 = vld [vmem:[%s2 + $0x10] sm:$0xff]
          %v387 = vld [vmem:[%s2 + $0x18] sm:$0xff]
          %v388 = vld [vmem:[%s2 + $0x20] sm:$0xff]
          %v389 = vld [vmem:[%s2 + $0x28] sm:$0xff]
          %v390 = vld [vmem:[%s2 + $0x30] sm:$0xff]
          %v391 = vld [vmem:[%s2 + $0x38] sm:$0xff]
          %v392 = vld [vmem:[%s2 + $0x40] sm:$0xff]
          %v393 = vld [vmem:[%s2 + $0x48] sm:$0xff]
          %v394 = vld [vmem:[%s2 + $0x50] sm:$0xff]
          %v395 = vld [vmem:[%s2 + $0x58] sm:$0xff]
          %v396 = vld [vmem:[%s2 + $0x60] sm:$0xff]
          %v397 = vld [vmem:[%s2 + $0x68] sm:$0xff]
          %v398 = vld [vmem:[%s2 + $0x70] sm:$0xff]
          %v399 = vld [vmem:[%s2 + $0x78] sm:$0xff]
          %400 = vmatprep.subr.mxu0 0.0
          %401 = vmatpush1.msra.mxu0 %v384
          %402 = vmatprep.subr.mxu0 0.0
          %403 = vmatpush1.msra.mxu0 %v385
          %404 = vmatprep.subr.mxu0 0.0
          %405 = vmatpush1.msra.mxu0 %v386
          %406 = vmatprep.subr.mxu0 0.0
          %407 = vmatpush1.msra.mxu0 %v387
          %408 = vmatprep.subr.mxu0 0.0
          %409 = vmatpush1.msra.mxu0 %v388
          %410 = vmatprep.subr.mxu0 0.0
          %411 = vmatpush1.msra.mxu0 %v389
          %412 = vmatprep.subr.mxu0 0.0
          %413 = vmatpush1.msra.mxu0 %v390
          %414 = vmatprep.subr.mxu0 0.0
          %415 = vmatpush1.msra.mxu0 %v391
          %416 = vmatprep.subr.mxu0 0.0
          %417 = vmatpush1.msra.mxu0 %v392
          %418 = vmatprep.subr.mxu0 0.0
          %419 = vmatpush1.msra.mxu0 %v393
          %420 = vmatprep.subr.mxu0 0.0
          %421 = vmatpush1.msra.mxu0 %v394
          %422 = vmatprep.subr.mxu0 0.0
          %423 = vmatpush1.msra.mxu0 %v395
          %424 = vmatprep.subr.mxu0 0.0
          %425 = vmatpush1.msra.mxu0 %v396
          %426 = vmatprep.subr.mxu0 0.0
          %427 = vmatpush1.msra.mxu0 %v397
          %428 = vmatprep.subr.mxu0 0.0
          %429 = vmatpush1.msra.mxu0 %v398
          %430 = vmatprep.subr.mxu0 0.0
          %431 = vmatpush1.msra.mxu0 %v399
          %432 = vmatprep.subr.mxu0 0.0
          %433 = vmatpush1.msra.mxu0 0.0
          %434 = vmatprep.subr.mxu0 0.0
          %435 = vmatpush1.msra.mxu0 0.0
          %436 = vmatprep.subr.mxu0 0.0
          %437 = vmatpush1.msra.mxu0 0.0
          %438 = vmatprep.subr.mxu0 0.0
          %439 = vmatpush1.msra.mxu0 0.0
          %440 = vmatprep.subr.mxu0 0.0
          %441 = vmatpush1.msra.mxu0 0.0
          %442 = vmatprep.subr.mxu0 0.0
          %443 = vmatpush1.msra.mxu0 0.0
          %444 = vmatprep.subr.mxu0 0.0
          %445 = vmatpush1.msra.mxu0 0.0
          %446 = vmatprep.subr.mxu0 0.0
          %447 = vmatpush1.msra.mxu0 0.0
          %448 = vmatprep.subr.mxu0 0.0
          %449 = vmatpush1.msra.mxu0 0.0
          %450 = vmatprep.subr.mxu0 0.0
          %451 = vmatpush1.msra.mxu0 0.0
          %452 = vmatprep.subr.mxu0 0.0
          %453 = vmatpush1.msra.mxu0 0.0
          %454 = vmatprep.subr.mxu0 0.0
          %455 = vmatpush1.msra.mxu0 0.0
          %456 = vmatprep.subr.mxu0 0.0
          %457 = vmatpush1.msra.mxu0 0.0
          %458 = vmatprep.subr.mxu0 0.0
          %459 = vmatpush1.msra.mxu0 0.0
          %460 = vmatprep.subr.mxu0 0.0
          %461 = vmatpush1.msra.mxu0 0.0
          %462 = vmatprep.subr.mxu0 0.0
          %463 = vmatpush1.msra.mxu0 0.0
          %464 = vmatprep.mubr.f32.mxu0 0.0
          %465 = vmatmul.mubr.f32.gmra.mrb[0].mxu0 %v383
          %v466 = vpop.f32.mrb[0].mxu0
          %v467 = vadd.f32 0.0, %v466
          %v468 = vpop.f32.mrb[0].mxu0
          %469 = vdwg.mxu0
          %v471 = vrot.slane %v467, 1
          %v473 = vadd.f32 %v467, %v471
          %v474 = vxor.u32 %v473, 2147483648
          %v475 = vmul.f32 %v474, 1.442695
          %v476 = vpow.pop %v475
          %v477 = vadd.f32 %v476, 1.0
          %v478 = vrcp.pop %v477
          %v479 = vmul.f32 1.0, %v478
          %480 = vst.msk [vmem:[%s185] sm:$0x1] %vm257, %v479
        $region40: #{tpu_custom_call.1} parent=31 // pred_fallthru
          _
        %s481 = sand.u32 %s107, 1
        %s482 = scalar_lea.sflag [#allocation4], %s481
        %s483 = sand.u32 %s107, 1
        %s484 = scalar_lea.vmem [#allocation3], %s483
        // Predicated region
        $region41: #{tpu_custom_call.1} parent=31 // pred_check
          %p485 = pneg %p117
        $region42: #{tpu_custom_call.1} parent=31 // pred_check_branch
          %487 = sbr.rel (%p485) target = $region44
        $region43: #{tpu_custom_call.1} parent=31 // pred_region
          %s489 = ssub.s32 16, 16
          %490 = vsyncadd %s482, %s489
          %s491 = smul.addr %s21, 16
          %s492 = scalar_lea.hbm %s3, %s491
          %s494 = sshll.u32 %s484, 4
          %s495 = int_to_ptr.vmem [resolvable:$true] %s494
          %497 = dma.vmem_to_hbm [thread:$0]  %s495, 16, %s492, %s482
        $region44: #{tpu_custom_call.1} parent=31 // pred_fallthru
          _
      $region32: #{tpu_custom_call.1} parent=5 // pred_fallthru
        _
      %p498 = scmp.le.s32.totalorder 2, %s12
      // Predicated region
      $region45: #{tpu_custom_call.1} parent=5 // pred_check
        %p499 = pneg %p498
      $region46: #{tpu_custom_call.1} parent=5 // pred_check_branch
        %501 = sbr.rel (%p499) target = $region48
      $region47: #{tpu_custom_call.1} parent=5 // pred_region
        %s502 = ssub.s32 %s12, 2
        // Predicated region
        $region49: #{tpu_custom_call.1} parent=47 // pred_check
          %p503 = pneg %p123
        $region50: #{tpu_custom_call.1} parent=47 // pred_check_branch
          %505 = sbr.rel (%p503) target = $region52
        $region51: #{tpu_custom_call.1} parent=47 // pred_region
          %s506 = sand.u32 %s108, 1
          %s507 = scalar_lea.sflag [#allocation4], %s506
          %s508 = sand.u32 %s108, 1
          %s509 = scalar_lea.vmem [#allocation3], %s508
          %510 = dma.done %s507, 16
        $region52: #{tpu_custom_call.1} parent=47 // pred_fallthru
          _
      $region48: #{tpu_custom_call.1} parent=5 // pred_fallthru
        _
    $region6: #{tpu_custom_call.1} parent=1 // loop_footer
      %s16 = sadd.s32 1, %s12
    $region7: #{tpu_custom_call.1} parent=1 // loop_footer_branch
      %11 = sbr.rel target = $region3
    $region8: #{tpu_custom_call.1} parent=1 // loop_exit
      _
    %511 = vsyncpa [#allocation4], 1
    %s512 = scalar_lea.sflag [#allocation4], 1
    %513 = vsyncpa %s512, 1

</llo_original>
